<compile_context>
chip_gen: v7x
topology: tpu7x:2x2x1
jax: 0.10.0
libtpu: 0.0.40
codegen_flags: <defaults>
</compile_context>

<pallas_src>
import jax
import jax.numpy as jnp
from jax.experimental import pallas as pl
from jax.experimental.pallas import tpu as pltpu


# -----------------------------------------------------------------------------
# Kernels
# -----------------------------------------------------------------------------

def _normalize_rows(x):
    # F.normalize(p=2, dim=1): x / max(||x||_2, 1e-12) == x * rsqrt(max(ss, 1e-24))
    sumsq = jnp.sum(x * x, axis=1, keepdims=True)
    return x * jax.lax.rsqrt(jnp.maximum(sumsq, 1e-24))


def _resident_kernel(lat_ref, w_ref, b_ref, out_ref):
    """All L weights resident in VMEM; layer loop statically unrolled.

    lat_ref: (TB, D) f32         w_ref: (L, D, D) bf16 (resident)
    b_ref:   (L, 1, D) f32       out_ref: (TB, D)
    """
    h = _normalize_rows(lat_ref[...].astype(jnp.float32)).astype(jnp.bfloat16)
    num_layers = w_ref.shape[0]
    for l in range(num_layers):                      # static unroll
        y = jnp.dot(h, w_ref[l], preferred_element_type=jnp.float32)
        y = y + b_ref[l]                             # f32 bias add
        y = jnp.maximum(y, 0.2 * y)                  # LeakyReLU(0.2)
        if l + 1 < num_layers:
            h = y.astype(jnp.bfloat16)               # bf16 carried state
        else:
            out_ref[...] = y.astype(out_ref.dtype)


def _streamed_kernel(lat_ref, w_ref, b_ref, out_ref, h_ref):
    """Weights streamed one layer per grid step (layer axis = grid axis 1).

    lat_ref: (TB, D) f32 (same block across the layer axis -> fetched once)
    w_ref:   (1, D, D) bf16 (this layer's weight; double-buffered by Pallas so
             the next layer's DMA overlaps this layer's matmul)
    b_ref:   (1, 1, D) f32
    out_ref: (TB, D)            h_ref: (TB, D) bf16 VMEM scratch (carried state)
    """
    l = pl.program_id(1)

    @pl.when(l == 0)
    def _():
        h_ref[...] = _normalize_rows(
            lat_ref[...].astype(jnp.float32)).astype(jnp.bfloat16)

    y = jnp.dot(h_ref[...], w_ref[0], preferred_element_type=jnp.float32)
    y = y + b_ref[0]
    y = jnp.maximum(y, 0.2 * y)
    h_ref[...] = y.astype(jnp.bfloat16)

    @pl.when(l == pl.num_programs(1) - 1)
    def _():
        out_ref[...] = y.astype(out_ref.dtype)


# -----------------------------------------------------------------------------
# Wrappers
# -----------------------------------------------------------------------------

def prepare_mapping_params(weights_io, biases):
    """One-time parameter preparation. Call OUTSIDE the per-step hot path.

    weights_io: (L, D_in, D_out) float  (PyTorch Linear.weight is (out, in);
                transpose it once when exporting so the kernel does x @ W + b)
    biases:     (L, D_out) float
    """
    L, _, D = weights_io.shape
    return {
        "weights": jnp.asarray(weights_io, dtype=jnp.bfloat16),
        "biases": jnp.asarray(biases, dtype=jnp.float32).reshape(L, 1, D),
    }


def _pick_batch_tile(B):
    # Cap at 256 rows (a 256-row tile already fills the 256-wide MXU; larger
    # tiles only grow f32 intermediates), and prefer >= 2 batch tiles so the
    # "parallel" axis can shard across v7x's two TensorCores.
    if B <= 8 or B % 8 != 0:
        return B
    bt = min(256, max(8, (B // 2) // 8 * 8))
    while B % bt != 0:
        bt -= 8
    return bt


def _cost_estimate(B, D, L):
    return pl.CostEstimate(
        flops=2 * B * D * D * L,
        transcendentals=B,  # one rsqrt per row
        bytes_accessed=L * D * D * 2 + L * D * 4 + 2 * B * D * 4,
    )


def _call_resident(latent, w_bf16, b_f32, batch_tile, single_buffer):
    B, D = latent.shape
    L = w_bf16.shape[0]
    resident_kw = (dict(pipeline_mode=pl.Buffered(buffer_count=1))
                   if single_buffer else {})
    w_bufs = 1 if single_buffer else 2
    vmem_limit = int(min(
        w_bufs * L * D * D * 2 + 2 * L * D * 4 + 4 * batch_tile * D * 4
        + (8 << 20),
        64 * 1024 * 1024))
    return pl.pallas_call(
        _resident_kernel,
        out_shape=jax.ShapeDtypeStruct((B, D), latent.dtype),
        grid_spec=pltpu.PrefetchScalarGridSpec(
            num_scalar_prefetch=0,
            grid=(B // batch_tile,),
            in_specs=[
                pl.BlockSpec((batch_tile, D), lambda b: (b, 0)),
                # resident across the batch grid; single-buffered when supported
                pl.BlockSpec((L, D, D), lambda b: (0, 0, 0), **resident_kw),
                pl.BlockSpec((L, 1, D), lambda b: (0, 0, 0), **resident_kw),
            ],
            out_specs=pl.BlockSpec((batch_tile, D), lambda b: (b, 0)),
        ),
        compiler_params=pltpu.CompilerParams(
            dimension_semantics=("parallel",),
            vmem_limit_bytes=vmem_limit,
        ),
        cost_estimate=_cost_estimate(B, D, L),
    )(latent, w_bf16, b_f32)


def _call_streamed(latent, w_bf16, b_f32, batch_tile):
    B, D = latent.shape
    L = w_bf16.shape[0]
    vmem_limit = int(min(
        2 * D * D * 2 + 2 * D * 4 + 4 * batch_tile * D * 4
        + batch_tile * D * 2 + (8 << 20),
        64 * 1024 * 1024))
    return pl.pallas_call(
        _streamed_kernel,
        out_shape=jax.ShapeDtypeStruct((B, D), latent.dtype),
        grid_spec=pltpu.PrefetchScalarGridSpec(
            num_scalar_prefetch=0,
            grid=(B // batch_tile, L),
            in_specs=[
                pl.BlockSpec((batch_tile, D), lambda b, l: (b, 0)),
                pl.BlockSpec((1, D, D), lambda b, l: (l, 0, 0)),
                pl.BlockSpec((1, 1, D), lambda b, l: (l, 0, 0)),
            ],
            out_specs=pl.BlockSpec((batch_tile, D), lambda b, l: (b, 0)),
            scratch_shapes=[pltpu.VMEM((batch_tile, D), jnp.bfloat16)],
        ),
        compiler_params=pltpu.CompilerParams(
            dimension_semantics=("parallel", "arbitrary"),
            vmem_limit_bytes=vmem_limit,
        ),
        cost_estimate=_cost_estimate(B, D, L),
    )(latent, w_bf16, b_f32)


def mapping_network(latent, params, *, batch_tile=None, mode="auto"):
    """StyleGAN mapping-network forward (default label_dim=0 path).

    latent: (B, D) float32 (B % 8 == 0, D % 128 == 0)
    params: dict from prepare_mapping_params() (bf16 weights, f32 biases)
    mode:   "stream" (overlap per-layer weight DMA with compute; small batch),
            "resident" (load all weights once; many batch tiles), or "auto".
    """
    w = params["weights"]
    b = params["biases"]
    B, D = latent.shape
    L = w.shape[0]
    assert w.shape == (L, D, D) and b.shape == (L, 1, D)

    if batch_tile is None:
        batch_tile = _pick_batch_tile(B)
    assert B % batch_tile == 0, "batch must be divisible by the batch tile"
    num_tiles = B // batch_tile

    if mode == "auto":
        # <=2 tiles: streaming reads weights at most twice (once per v7x core
        # anyway) and fully overlaps the weight DMA with compute.  More tiles:
        # keep the weights resident so they are read from HBM only once.
        mode = "stream" if num_tiles <= 2 else "resident"

    if mode == "stream":
        return _call_streamed(latent, w, b, batch_tile)

    # Resident path: try single-buffered resident blocks; fall back to default
    # double buffering if this jax version rejects pl.Buffered(buffer_count=1).
    try:
        return _call_resident(latent, w, b, batch_tile, single_buffer=True)
    except Exception:
        return _call_resident(latent, w, b, batch_tile, single_buffer=False)


# -----------------------------------------------------------------------------
# References
# -----------------------------------------------------------------------------

def mapping_network_ref_f32(latent, weights_io, biases):
    x = latent.astype(jnp.float32)
    norm = jnp.maximum(jnp.sqrt(jnp.sum(x * x, axis=1, keepdims=True)), 1e-12)
    x = x / norm
    for l in range(weights_io.shape[0]):
        y = x @ weights_io[l] + biases[l]
        x = jnp.maximum(y, 0.2 * y)
    return x


def mapping_network_ref_bf16(latent, weights_io, biases):
    # Mirrors the kernel numerics: bf16 matmul operands, f32 accumulation.
    x = latent.astype(jnp.float32)
    norm = jnp.maximum(jnp.sqrt(jnp.sum(x * x, axis=1, keepdims=True)), 1e-12)
    x = x / norm
    w = weights_io.astype(jnp.bfloat16)
    for l in range(weights_io.shape[0]):
        y = jnp.dot(x.astype(jnp.bfloat16), w[l],
                    preferred_element_type=jnp.float32) + biases[l]
        x = jnp.maximum(y, 0.2 * y)
    return x


if __name__ == "__main__":
    # Small TPU-friendly shapes consistent with the module structure:
    # latent_dim = hidden = 128 (module default 512), num_layers = 8,
    # label_dim = 0 (default -> no label-embedding branch).
    B, D, L = 16, 128, 8

    key = jax.random.PRNGKey(0)
    k_lat, k_w, k_b = jax.random.split(key, 3)

    latent = jax.random.normal(k_lat, (B, D), dtype=jnp.float32)
    # Linear weight stored pre-transposed as (in, out); scaled so activations
    # keep O(0.1) magnitude through 8 layers.
    w_scale = (2.0 / D) ** 0.5
    weights_io = jax.random.normal(k_w, (L, D, D), dtype=jnp.float32) * w_scale
    biases = jax.random.normal(k_b, (L, D), dtype=jnp.float32) * 0.01

    # One-time parameter preparation (bf16 cast) -- OUTSIDE the hot path.
    params = prepare_mapping_params(weights_io, biases)

    # Exercise both execution paths plus the auto heuristic.
    out_stream = jax.block_until_ready(
        mapping_network(latent, params, mode="stream"))
    out_resident = jax.block_until_ready(
        mapping_network(latent, params, mode="resident"))
    out_auto = jax.block_until_ready(mapping_network(latent, params))

    ref_bf16 = mapping_network_ref_bf16(latent, weights_io, biases)
    ref_f32 = mapping_network_ref_f32(latent, weights_io, biases)

    for name, out in (("stream", out_stream), ("resident", out_resident),
                      ("auto", out_auto)):
        assert out.shape == (B, D)
        # Tight check vs the numerics-matched (bf16 operand / f32 accum) ref.
        assert jnp.allclose(out, ref_bf16, atol=2e-3, rtol=2e-3), \
            f"{name}: mismatch vs bf16-operand reference"
        # Looser sanity check vs the pure-f32 PyTorch-equivalent reference.
        assert jnp.allclose(out, ref_f32, atol=3e-2, rtol=3e-2), \
            f"{name}: mismatch vs f32 reference"

    # TODO(synk): optional label-embedding branch (label_dim > 0) not implemented; default label_dim=0.
    print("KERNEL_OK")
</pallas_src>

<mosaic_0001>
module attributes {stable_mosaic.version = 11 : i64} {
  func.func @_streamed_kernel(%arg0: i32, %arg1: i32, %arg2: memref<8x128xf32, #tpu.memory_space<vmem>>, %arg3: memref<1x128x128xbf16, #tpu.memory_space<vmem>>, %arg4: memref<1x1x128xf32, #tpu.memory_space<vmem>>, %arg5: memref<8x128xf32, #tpu.memory_space<vmem>>, %arg6: memref<8x128xbf16, #tpu.memory_space<vmem>>) attributes {dimension_semantics = [#tpu.dimension_semantics<parallel>, #tpu.dimension_semantics<arbitrary>], iteration_bounds = array<i64: 2, 8>, scalar_prefetch = 0 : i64, scratch_operands = 1 : i64, tpu.core_type = #tpu.core_type<tc>, window_params = [{transform_indices = @transform_0, window_bounds = array<i64: 8, 128>}, {transform_indices = @transform_1, window_bounds = array<i64: 1, 128, 128>}, {transform_indices = @transform_2, window_bounds = array<i64: 1, 1, 128>}, {transform_indices = @transform_3, window_bounds = array<i64: 8, 128>}]} {
    %c0_i32 = arith.constant 0 : i32
    %0 = arith.cmpi eq, %arg1, %c0_i32 : i32
    %1 = arith.extui %0 : i1 to i32
    %c0_i32_0 = arith.constant 0 : i32
    %2 = arith.cmpi ne, %1, %c0_i32_0 : i32
    scf.if %2 {
      %c0_12 = arith.constant 0 : index
      %c0_13 = arith.constant 0 : index
      %19 = vector.load %arg2[%c0_12, %c0_13] : memref<8x128xf32, #tpu.memory_space<vmem>>, vector<8x128xf32>
      %20 = arith.mulf %19, %19 : vector<8x128xf32>
      %cst_14 = arith.constant dense<0.000000e+00> : vector<8xf32>
      %21 = vector.multi_reduction <add>, %20, %cst_14 [1] : vector<8x128xf32> to vector<8xf32>
      %22 = vector.shape_cast %21 : vector<8xf32> to vector<8x1xf32>
      %cst_15 = arith.constant 1.000000e-24 : f32
      %23 = vector.broadcast %cst_15 : f32 to vector<8x1xf32>
      %24 = arith.maximumf %22, %23 : vector<8x1xf32>
      %25 = math.rsqrt %24 : vector<8x1xf32>
      %26 = vector.broadcast %25 : vector<8x1xf32> to vector<8x128xf32>
      %27 = arith.mulf %19, %26 : vector<8x128xf32>
      %28 = arith.truncf %27 : vector<8x128xf32> to vector<8x128xbf16>
      %c0_16 = arith.constant 0 : index
      %c0_17 = arith.constant 0 : index
      %29 = vector.load %arg6[%c0_16, %c0_17] : memref<8x128xbf16, #tpu.memory_space<vmem>>, vector<8x128xbf16>
      tpu.vector_store %arg6[%c0_16, %c0_17], %28 {strides = array<i32>} : memref<8x128xbf16, #tpu.memory_space<vmem>>, vector<8x128xbf16>,
    } else {
    }
    %c0 = arith.constant 0 : index
    %c0_1 = arith.constant 0 : index
    %3 = vector.load %arg6[%c0, %c0_1] : memref<8x128xbf16, #tpu.memory_space<vmem>>, vector<8x128xbf16>
    %c0_2 = arith.constant 0 : index
    %c0_3 = arith.constant 0 : index
    %c0_4 = arith.constant 0 : index
    %4 = vector.load %arg3[%c0_2, %c0_3, %c0_4] : memref<1x128x128xbf16, #tpu.memory_space<vmem>>, vector<1x128x128xbf16>
    %5 = vector.shape_cast %4 : vector<1x128x128xbf16> to vector<128x128xbf16>
    %cst = arith.constant dense<0.000000e+00> : vector<8x128xf32>
    %6 = tpu.matmul %3, %5, %cst {dimension_numbers = #tpu.dot_dimension_numbers<[1], [0], [0], [1], [0, 0, 1, 1], [], []>} : vector<8x128xbf16>, vector<128x128xbf16>, vector<8x128xf32> -> vector<8x128xf32>
    %c0_5 = arith.constant 0 : index
    %c0_6 = arith.constant 0 : index
    %c0_7 = arith.constant 0 : index
    %7 = vector.load %arg4[%c0_5, %c0_6, %c0_7] : memref<1x1x128xf32, #tpu.memory_space<vmem>>, vector<1x1x128xf32>
    %8 = vector.shape_cast %7 : vector<1x1x128xf32> to vector<1x128xf32>
    %9 = vector.broadcast %8 : vector<1x128xf32> to vector<8x128xf32>
    %10 = arith.addf %6, %9 : vector<8x128xf32>
    %cst_8 = arith.constant 2.000000e-01 : f32
    %11 = vector.broadcast %cst_8 : f32 to vector<8x128xf32>
    %12 = arith.mulf %11, %10 : vector<8x128xf32>
    %13 = arith.maximumf %10, %12 : vector<8x128xf32>
    %14 = arith.truncf %13 : vector<8x128xf32> to vector<8x128xbf16>
    %c0_9 = arith.constant 0 : index
    %c0_10 = arith.constant 0 : index
    %15 = vector.load %arg6[%c0_9, %c0_10] : memref<8x128xbf16, #tpu.memory_space<vmem>>, vector<8x128xbf16>
    tpu.vector_store %arg6[%c0_9, %c0_10], %14 {strides = array<i32>} : memref<8x128xbf16, #tpu.memory_space<vmem>>, vector<8x128xbf16>,
    %c7_i32 = arith.constant 7 : i32
    %16 = arith.cmpi eq, %arg1, %c7_i32 : i32
    %17 = arith.extui %16 : i1 to i32
    %c0_i32_11 = arith.constant 0 : i32
    %18 = arith.cmpi ne, %17, %c0_i32_11 : i32
    scf.if %18 {
      %c0_12 = arith.constant 0 : index
      %c0_13 = arith.constant 0 : index
      %19 = vector.load %arg5[%c0_12, %c0_13] : memref<8x128xf32, #tpu.memory_space<vmem>>, vector<8x128xf32>
      tpu.vector_store %arg5[%c0_12, %c0_13], %13 {strides = array<i32>} : memref<8x128xf32, #tpu.memory_space<vmem>>, vector<8x128xf32>,
    } else {
    }
    return
  }
  func.func @transform_0(%arg0: i32, %arg1: i32) -> (i32, i32) {
    %c0_i32 = arith.constant 0 : i32
    %c0_i32_0 = arith.constant 0 : i32
    return %arg0, %c0_i32 : i32, i32
  }
  func.func @transform_1(%arg0: i32, %arg1: i32) -> (i32, i32, i32) {
    %c0_i32 = arith.constant 0 : i32
    %c0_i32_0 = arith.constant 0 : i32
    %c0_i32_1 = arith.constant 0 : i32
    return %arg1, %c0_i32, %c0_i32_0 : i32, i32, i32
  }
  func.func @transform_2(%arg0: i32, %arg1: i32) -> (i32, i32, i32) {
    %c0_i32 = arith.constant 0 : i32
    %c0_i32_0 = arith.constant 0 : i32
    %c0_i32_1 = arith.constant 0 : i32
    return %arg1, %c0_i32, %c0_i32_0 : i32, i32, i32
  }
  func.func @transform_3(%arg0: i32, %arg1: i32) -> (i32, i32) {
    %c0_i32 = arith.constant 0 : i32
    %c0_i32_0 = arith.constant 0 : i32
    return %arg0, %c0_i32 : i32, i32
  }
}

</mosaic_0001>

<llo_original>
// kernel: tpu_custom_call.1
$region0: #{tpu_custom_call.1}
  #allocation0 [shape = 'u32[]', space=smem, size = 0x4, offset = 0x4, fixed_abs, tag = 'smem constant byte address 0x4 - core index']
  #allocation1 [shape = 'u32[144,128]{1,0:T(1,128)}', space=vmem, size = 0x12000, scoped, tag = 'internal scratch']
  #allocation2 [shape = 'bf16[8,128]{1,0:T(8,128)(2,1)}', space=vmem, size = 0x800, scoped, tag = 'scratch operand']
  %s0 = inlined_call_operand.hbm [shape: f32[16,128], index: 0, kind: input, shape index: {}]
  %s1 = inlined_call_operand.hbm [shape: bf16[8,128,128], index: 1, kind: input, shape index: {}]
  %s2 = inlined_call_operand.hbm [shape: f32[8,1,128], index: 2, kind: input, shape index: {}]
  %s3 = inlined_call_operand.hbm [shape: f32[16,128], index: 3, kind: output, shape index: {}]
  %s4 = sld [smem:[#allocation0]]
  $region65: #{tpu_custom_call.1} parent=0
    _
  %s6 = ssub.s32 1, %s4
  %s7 = scalar_select 0, %s6, %s4
  $region1: #{tpu_custom_call.1} parent=0
    #allocation3 [shape = 'u8[8192]{0}', space=vmem, size = 0x2000, scoped, tag = 'input window, operand 0']
    #allocation4 [shape = 's32[2]{0}', space=sflag, size = 0x8, scoped, tag = 'scoped memory for tpu_custom_call.1']
    #allocation5 [shape = 's32[2]{0}', space=sflag, size = 0x8, scoped, tag = 'scoped memory for tpu_custom_call.1']
    #allocation6 [shape = 'u8[65536]{0}', space=vmem, size = 0x10000, scoped, tag = 'input window, operand 1']
    #allocation7 [shape = 's32[2]{0}', space=sflag, size = 0x8, scoped, tag = 'scoped memory for tpu_custom_call.1']
    #allocation8 [shape = 'u8[1024]{0}', space=vmem, size = 0x400, scoped, tag = 'input window, operand 2']
    #allocation9 [shape = 'u8[8192]{0}', space=vmem, size = 0x2000, scoped, tag = 'output window, operand 0']
    %8 = vsyncpa [#allocation4], 0
    %s9 = scalar_lea.sflag [#allocation4], 1
    %10 = vsyncpa %s9, 0
    %11 = vsyncpa [#allocation7], 0
    %s12 = scalar_lea.sflag [#allocation7], 1
    %13 = vsyncpa %s12, 0
    %14 = vsyncpa [#allocation5], 0
    %s15 = scalar_lea.sflag [#allocation5], 1
    %16 = vsyncpa %s15, 0
    loop: start=0, step=1, limit=18
    $region2: #{tpu_custom_call.1} parent=1 // loop_pre_header
      _
    $region3: #{tpu_custom_call.1} parent=1 // loop_header
      %s18 = sphi 0, %s22
      %p19 = scmp.ge.s32.totalorder %s18, 18
      %s25 = sphi 0, %s37
      %s26 = sphi 0, %s33
      %s27 = sphi 0, %s25
      %s28 = sphi 0, %s26
      %s29 = sphi 0, %s27
      %s30 = sphi 0, %s28
      %s40 = sphi 0, %s42
      %s43 = sphi 0, %s40
      %s44 = sphi 0, %s43
      %s60 = sphi 0, %s44
      %s66 = sphi 0, %s68
      %s69 = sphi 0, %s66
      %s70 = sphi 0, %s69
      %s86 = sphi 0, %s70
      %s92 = sphi 0, %s94
      %s95 = sphi 0, %s92
      %s96 = sphi 0, %s95
      %s112 = sphi 0, %s96
      %s118 = sphi 0, %s120
      %s121 = sphi 0, %s118
      %s122 = sphi 0, %s121
      %s138 = sphi 0, %s122
    $region4: #{tpu_custom_call.1} parent=1 // loop_header_branch
      %21 = sbr.rel (%p19) target = $region8
    $region5: #{tpu_custom_call.1} parent=1 // loop_body
      %s23 = ssub.s32 %s18, 1
      %s24 = ssub.s32 %s18, 2
      %s31 = sadd.s32 1, %s26
      %p32 = scmp.ge.s32.totalorder %s31, 8
      %s33 = scalar_select %p32, 0, %s31
      %s34 = sadd.s32 1, %s25
      %s35 = scalar_select %p32, %s34, %s25
      %p36 = scmp.ge.s32.totalorder %s35, 2
      %s37 = scalar_select %p36, 0, %s35
      %s38 = ssub.s32 %s25, %s37
      %p39 = scmp.eq.s32.totalorder %s38, 0
      %s41 = sadd.s32 %s40, 1
      %s42 = scalar_select %p39, %s40, %s41
      %p45 = pneg %p39
      %p46 = scmp.eq.s32.totalorder %s18, 15
      %p47 = por %p45, %p46
      %p48 = scmp.ne.s32.totalorder %s40, %s43
      %p49 = scmp.eq.s32.totalorder %s18, 0
      %p50 = por %p48, %p49
      %p51 = scmp.ne.s32.totalorder %s40, %s43
      %p52 = scmp.eq.s32.totalorder %s23, 15
      %p53 = por %p51, %p52
      %p54 = scmp.ne.s32.totalorder %s43, %s44
      %p55 = scmp.eq.s32.totalorder %s23, 0
      %p56 = por %p54, %p55
      %p57 = scmp.ne.s32.totalorder %s43, %s44
      %p58 = scmp.eq.s32.totalorder %s24, 15
      %p59 = por %p57, %p58
      %p61 = scmp.ne.s32.totalorder %s44, %s60
      %p62 = scmp.eq.s32.totalorder %s24, 0
      %p63 = por %p61, %p62
      %s64 = ssub.s32 %s26, %s33
      %p65 = scmp.eq.s32.totalorder %s64, 0
      %s67 = sadd.s32 %s66, 1
      %s68 = scalar_select %p65, %s66, %s67
      %p71 = pneg %p65
      %p72 = scmp.eq.s32.totalorder %s18, 15
      %p73 = por %p71, %p72
      %p74 = scmp.ne.s32.totalorder %s66, %s69
      %p75 = scmp.eq.s32.totalorder %s18, 0
      %p76 = por %p74, %p75
      %p77 = scmp.ne.s32.totalorder %s66, %s69
      %p78 = scmp.eq.s32.totalorder %s23, 15
      %p79 = por %p77, %p78
      %p80 = scmp.ne.s32.totalorder %s69, %s70
      %p81 = scmp.eq.s32.totalorder %s23, 0
      %p82 = por %p80, %p81
      %p83 = scmp.ne.s32.totalorder %s69, %s70
      %p84 = scmp.eq.s32.totalorder %s24, 15
      %p85 = por %p83, %p84
      %p87 = scmp.ne.s32.totalorder %s70, %s86
      %p88 = scmp.eq.s32.totalorder %s24, 0
      %p89 = por %p87, %p88
      %s90 = ssub.s32 %s26, %s33
      %p91 = scmp.eq.s32.totalorder %s90, 0
      %s93 = sadd.s32 %s92, 1
      %s94 = scalar_select %p91, %s92, %s93
      %p97 = pneg %p91
      %p98 = scmp.eq.s32.totalorder %s18, 15
      %p99 = por %p97, %p98
      %p100 = scmp.ne.s32.totalorder %s92, %s95
      %p101 = scmp.eq.s32.totalorder %s18, 0
      %p102 = por %p100, %p101
      %p103 = scmp.ne.s32.totalorder %s92, %s95
      %p104 = scmp.eq.s32.totalorder %s23, 15
      %p105 = por %p103, %p104
      %p106 = scmp.ne.s32.totalorder %s95, %s96
      %p107 = scmp.eq.s32.totalorder %s23, 0
      %p108 = por %p106, %p107
      %p109 = scmp.ne.s32.totalorder %s95, %s96
      %p110 = scmp.eq.s32.totalorder %s24, 15
      %p111 = por %p109, %p110
      %p113 = scmp.ne.s32.totalorder %s96, %s112
      %p114 = scmp.eq.s32.totalorder %s24, 0
      %p115 = por %p113, %p114
      %s116 = ssub.s32 %s25, %s37
      %p117 = scmp.eq.s32.totalorder %s116, 0
      %s119 = sadd.s32 %s118, 1
      %s120 = scalar_select %p117, %s118, %s119
      %p123 = pneg %p117
      %p124 = scmp.eq.s32.totalorder %s18, 15
      %p125 = por %p123, %p124
      %p126 = scmp.ne.s32.totalorder %s118, %s121
      %p127 = scmp.eq.s32.totalorder %s18, 0
      %p128 = por %p126, %p127
      %p129 = scmp.ne.s32.totalorder %s118, %s121
      %p130 = scmp.eq.s32.totalorder %s23, 15
      %p131 = por %p129, %p130
      %p132 = scmp.ne.s32.totalorder %s121, %s122
      %p133 = scmp.eq.s32.totalorder %s23, 0
      %p134 = por %p132, %p133
      %p135 = scmp.ne.s32.totalorder %s121, %s122
      %p136 = scmp.eq.s32.totalorder %s24, 15
      %p137 = por %p135, %p136
      %p139 = scmp.ne.s32.totalorder %s122, %s138
      %p140 = scmp.eq.s32.totalorder %s24, 0
      %p141 = por %p139, %p140
      %p142 = scmp.le.s32.totalorder 1, %s18
      %p143 = scmp.lt.s32.totalorder %s18, 17
      %p144 = pnand %p142, %p143
      %p145 = pneg %p144
      // Predicated region
      $region9: #{tpu_custom_call.1} parent=5 // pred_check
        _
      $region10: #{tpu_custom_call.1} parent=5 // pred_check_branch
        %147 = sbr.rel (%p144) target = $region12
      $region11: #{tpu_custom_call.1} parent=5 // pred_region
        %s148 = ssub.s32 %s18, 1
      $region12: #{tpu_custom_call.1} parent=5 // pred_fallthru
        _
      %p149 = scmp.lt.s32.totalorder %s18, 16
      // Predicated region
      $region13: #{tpu_custom_call.1} parent=5 // pred_check
        %p150 = pneg %p149
      $region14: #{tpu_custom_call.1} parent=5 // pred_check_branch
        %152 = sbr.rel (%p150) target = $region16
      $region15: #{tpu_custom_call.1} parent=5 // pred_region
        // Predicated region
        $region17: #{tpu_custom_call.1} parent=15 // pred_check
          %p153 = pneg %p50
        $region18: #{tpu_custom_call.1} parent=15 // pred_check_branch
          %155 = sbr.rel (%p153) target = $region20
        $region19: #{tpu_custom_call.1} parent=15 // pred_region
          %s156 = sand.u32 %s40, 1
          %s157 = scalar_lea.sflag [#allocation4], %s156
          %s158 = sand.u32 %s40, 1
          %s159 = smul.addr %s158, 8
          %s160 = scalar_lea.vmem [#allocation3], %s159
          %s162 = ssub.s32 128, 128
          %163 = vsyncadd %s157, %s162
          %s164 = smul.addr %s25, 128
          %s165 = scalar_lea.hbm %s0, %s164
          %s167 = sshll.u32 %s160, 4
          %s168 = int_to_ptr.vmem [resolvable:$true] %s167
          %170 = dma.hbm_to_vmem [thread:$0]  %s165, 128, %s168, %s157
        $region20: #{tpu_custom_call.1} parent=15 // pred_fallthru
          _
        // Predicated region
        $region21: #{tpu_custom_call.1} parent=15 // pred_check
          %p171 = pneg %p76
        $region22: #{tpu_custom_call.1} parent=15 // pred_check_branch
          %173 = sbr.rel (%p171) target = $region24
        $region23: #{tpu_custom_call.1} parent=15 // pred_region
          %s174 = sand.u32 %s18, 1
          %s175 = scalar_lea.sflag [#allocation7], %s174
          %s176 = sand.u32 %s66, 1
          %s177 = smul.addr %s176, 64
          %s178 = scalar_lea.vmem [#allocation6], %s177
          %s180 = ssub.s32 1024, 1024
          %181 = vsyncadd %s175, %s180
          %s182 = smul.addr %s26, 16
          %s183 = smul.addr %s182, 64
          %s184 = scalar_lea.hbm %s1, %s183
          %s185 = sshll.u32 %s178, 4
          %s186 = int_to_ptr.vmem [resolvable:$true] %s185
          %191 = dma.hbm_to_vmem [thread:$0]  %s184, 1024, %s186, %s175, 64, 64, 4
        $region24: #{tpu_custom_call.1} parent=15 // pred_fallthru
          _
        // Predicated region
        $region25: #{tpu_custom_call.1} parent=15 // pred_check
          %p192 = pneg %p102
        $region26: #{tpu_custom_call.1} parent=15 // pred_check_branch
          %194 = sbr.rel (%p192) target = $region28
        $region27: #{tpu_custom_call.1} parent=15 // pred_region
          %s195 = sand.u32 %s18, 1
          %s196 = scalar_lea.sflag [#allocation7], %s195
          %s197 = sand.u32 %s92, 1
          %s198 = scalar_lea.vmem [#allocation8], %s197
          %s200 = ssub.s32 16, 16
          %201 = vsyncadd %s196, %s200
          %s202 = smul.addr %s26, 16
          %s203 = scalar_lea.hbm %s2, %s202
          %s205 = sshll.u32 %s198, 4
          %s206 = int_to_ptr.vmem [resolvable:$true] %s205
          %208 = dma.hbm_to_vmem [thread:$0]  %s203, 16, %s206, %s196
        $region28: #{tpu_custom_call.1} parent=15 // pred_fallthru
          _
      $region16: #{tpu_custom_call.1} parent=5 // pred_fallthru
        _
      %p209 = scmp.le.s32.totalorder 1, %s18
      %p210 = scmp.lt.s32.totalorder %s18, 17
      %p211 = pnand %p209, %p210
      %p212 = pneg %p211
      // Predicated region
      $region29: #{tpu_custom_call.1} parent=5 // pred_check
        _
      $region30: #{tpu_custom_call.1} parent=5 // pred_check_branch
        %214 = sbr.rel (%p211) target = $region32
      $region31: #{tpu_custom_call.1} parent=5 // pred_region
        %s215 = ssub.s32 %s18, 1
        %s216 = sand.u32 %s43, 1
        %s217 = scalar_lea.sflag [#allocation4], %s216
        %s218 = sand.u32 %s43, 1
        %s219 = smul.addr %s218, 8
        %s220 = scalar_lea.vmem [#allocation3], %s219
        // Predicated region
        $region33: #{tpu_custom_call.1} parent=31 // pred_check
          %p221 = pneg %p56
        $region34: #{tpu_custom_call.1} parent=31 // pred_check_branch
          %223 = sbr.rel (%p221) target = $region36
        $region35: #{tpu_custom_call.1} parent=31 // pred_region
          %224 = dma.done %s217, 128
        $region36: #{tpu_custom_call.1} parent=31 // pred_fallthru
          _
        %s225 = sand.u32 %s23, 1
        %s226 = scalar_lea.sflag [#allocation7], %s225
        %s227 = sand.u32 %s69, 1
        %s228 = smul.addr %s227, 64
        %s229 = scalar_lea.vmem [#allocation6], %s228
        // Predicated region
        $region37: #{tpu_custom_call.1} parent=31 // pred_check
          %p230 = pneg %p82
        $region38: #{tpu_custom_call.1} parent=31 // pred_check_branch
          %232 = sbr.rel (%p230) target = $region40
        $region39: #{tpu_custom_call.1} parent=31 // pred_region
          %233 = dma.done %s226, 1024
        $region40: #{tpu_custom_call.1} parent=31 // pred_fallthru
          _
        %s234 = sand.u32 %s23, 1
        %s235 = scalar_lea.sflag [#allocation7], %s234
        %s236 = sand.u32 %s95, 1
        %s237 = scalar_lea.vmem [#allocation8], %s236
        // Predicated region
        $region41: #{tpu_custom_call.1} parent=31 // pred_check
          %p238 = pneg %p108
        $region42: #{tpu_custom_call.1} parent=31 // pred_check_branch
          %240 = sbr.rel (%p238) target = $region44
        $region43: #{tpu_custom_call.1} parent=31 // pred_region
          %241 = dma.done %s235, 16
        $region44: #{tpu_custom_call.1} parent=31 // pred_fallthru
          _
        %s242 = sand.u32 %s43, 1
        %s243 = scalar_lea.sflag [#allocation4], %s242
        %s244 = sand.u32 %s43, 1
        %s245 = smul.addr %s244, 8
        %s246 = scalar_lea.vmem [#allocation3], %s245
        %p247 = pneg %p56
        %p248 = pneg %p53
        %s249 = sand.u32 %s23, 1
        %s250 = scalar_lea.sflag [#allocation7], %s249
        %s251 = sand.u32 %s69, 1
        %s252 = smul.addr %s251, 64
        %s253 = scalar_lea.vmem [#allocation6], %s252
        %p254 = pneg %p82
        %p255 = pneg %p79
        %s256 = sand.u32 %s23, 1
        %s257 = scalar_lea.sflag [#allocation7], %s256
        %s258 = sand.u32 %s95, 1
        %s259 = scalar_lea.vmem [#allocation8], %s258
        %p260 = pneg %p108
        %p261 = pneg %p105
        %p262 = pneg %p134
        %p263 = pneg %p131
        %s264 = sand.u32 %s121, 1
        %s265 = scalar_lea.sflag [#allocation5], %s264
        %s266 = sand.u32 %s121, 1
        %s267 = smul.addr %s266, 8
        %s268 = scalar_lea.vmem [#allocation9], %s267
        %p270 = scmp.eq.s32.totalorder %s28, 0
        // Predicated region
        $region45: #{tpu_custom_call.1} parent=31 // pred_check
          %p271 = pneg %p270
        $region46: #{tpu_custom_call.1} parent=31 // pred_check_branch
          %273 = sbr.rel (%p271) target = $region48
        $region47: #{tpu_custom_call.1} parent=31 // pred_region
          %v274 = vld [vmem:[%s220] sm:$0xff]
          %v275 = vmul.f32 %v274, %v274
          %276 = vadd.xlane.f32.xlu0 %v275
          %v277 = vpop.xlane.xlu0 %276
          %v278 = vmax.f32 %v277, 1e-24
          %v279 = vrsqrt.pop %v278
          %v280 = vmul.f32 %v274, %v279
          %v281 = vpack.c.bf16 %v280, %v280
          %282 = vst [vmem:[#allocation2] sm:$0xf] %v281
        $region48: #{tpu_custom_call.1} parent=31 // pred_fallthru
          _
        %v283 = vld [vmem:[#allocation2] sm:$0xf]
        %v284 = vld [vmem:[%s229] sm:$0xf]
        %v285 = vld [vmem:[%s229 + $0x4] sm:$0xf]
        %v286 = vld [vmem:[%s229 + $0x8] sm:$0xf]
        %v287 = vld [vmem:[%s229 + $0xc] sm:$0xf]
        %v288 = vld [vmem:[%s229 + $0x10] sm:$0xf]
        %v289 = vld [vmem:[%s229 + $0x14] sm:$0xf]
        %v290 = vld [vmem:[%s229 + $0x18] sm:$0xf]
        %v291 = vld [vmem:[%s229 + $0x1c] sm:$0xf]
        %v292 = vld [vmem:[%s229 + $0x20] sm:$0xf]
        %v293 = vld [vmem:[%s229 + $0x24] sm:$0xf]
        %v294 = vld [vmem:[%s229 + $0x28] sm:$0xf]
        %v295 = vld [vmem:[%s229 + $0x2c] sm:$0xf]
        %v296 = vld [vmem:[%s229 + $0x30] sm:$0xf]
        %v297 = vld [vmem:[%s229 + $0x34] sm:$0xf]
        %v298 = vld [vmem:[%s229 + $0x38] sm:$0xf]
        %v299 = vld [vmem:[%s229 + $0x3c] sm:$0xf]
        %v300 = vld [vmem:[%s237] sm:$0x1]
        %v302 = vlaneseq
        %v303 = vshrl.u32 %v302, 7
        %v304 = vsub.s32 0, %v303
        %v305 = vrot.slane %v300, %v304
        %v323 = vunpack.c.l.b16 %v284
        %v324 = vunpack.c.l.b16 %v285
        %v325 = vunpack.c.l.b16 %v286
        %v326 = vunpack.c.l.b16 %v287
        %v327 = vunpack.c.l.b16 %v288
        %v328 = vunpack.c.l.b16 %v289
        %v329 = vunpack.c.l.b16 %v290
        %v330 = vunpack.c.l.b16 %v291
        %v331 = vunpack.c.l.b16 %v292
        %v332 = vunpack.c.l.b16 %v293
        %v333 = vunpack.c.l.b16 %v294
        %v334 = vunpack.c.l.b16 %v295
        %v335 = vunpack.c.l.b16 %v296
        %v336 = vunpack.c.l.b16 %v297
        %v337 = vunpack.c.l.b16 %v298
        %v338 = vunpack.c.l.b16 %v299
        %v339 = vpack.c.b16 %v324, %v323
        %v340 = vpack.c.b16 %v326, %v325
        %v341 = vpack.c.b16 %v328, %v327
        %v342 = vpack.c.b16 %v330, %v329
        %v343 = vpack.c.b16 %v332, %v331
        %v344 = vpack.c.b16 %v334, %v333
        %v345 = vpack.c.b16 %v336, %v335
        %v346 = vpack.c.b16 %v338, %v337
        %355 = vmatprep.subr.bf16.mxu0 0
        %356 = vmatpush1.bf16.msra.mxu0 %v339
        %357 = vmatprep.subr.bf16.mxu0 0
        %358 = vmatpush1.bf16.msra.mxu0 %v340
        %359 = vmatprep.subr.bf16.mxu0 0
        %360 = vmatpush1.bf16.msra.mxu0 %v341
        %361 = vmatprep.subr.bf16.mxu0 0
        %362 = vmatpush1.bf16.msra.mxu0 %v342
        %363 = vmatprep.subr.bf16.mxu0 0
        %364 = vmatpush1.bf16.msra.mxu0 %v343
        %365 = vmatprep.subr.bf16.mxu0 0
        %366 = vmatpush1.bf16.msra.mxu0 %v344
        %367 = vmatprep.subr.bf16.mxu0 0
        %368 = vmatpush1.bf16.msra.mxu0 %v345
        %369 = vmatprep.subr.bf16.mxu0 0
        %370 = vmatpush1.bf16.msra.mxu0 %v346
        %371 = vmatprep.subr.bf16.mxu0 0
        %372 = vmatpush1.bf16.msra.mxu0 0
        %373 = vmatprep.subr.bf16.mxu0 0
        %374 = vmatpush1.bf16.msra.mxu0 0
        %375 = vmatprep.subr.bf16.mxu0 0
        %376 = vmatpush1.bf16.msra.mxu0 0
        %377 = vmatprep.subr.bf16.mxu0 0
        %378 = vmatpush1.bf16.msra.mxu0 0
        %379 = vmatprep.subr.bf16.mxu0 0
        %380 = vmatpush1.bf16.msra.mxu0 0
        %381 = vmatprep.subr.bf16.mxu0 0
        %382 = vmatpush1.bf16.msra.mxu0 0
        %383 = vmatprep.subr.bf16.mxu0 0
        %384 = vmatpush1.bf16.msra.mxu0 0
        %385 = vmatprep.subr.bf16.mxu0 0
        %386 = vmatpush1.bf16.msra.mxu0 0
        %387 = vmatprep.mubr.bf16.mxu0 0
        %388 = vmatmul.mubr.bf16.gmra.mrb[0].mxu0 %v283
        %v389 = vpop.f32.mrb[0].mxu0
        %v390 = vadd.f32 %v305, %v389
        %v391 = vpop.f32.mrb[0].mxu0
        %v392 = vpop.f32.mrb[0].mxu0
        %v393 = vpop.f32.mrb[0].mxu0
        %394 = vdwg.mxu0
        %v395 = vmul.f32 %v390, 0.2
        %v396 = vmax.f32 %v390, %v395
        %v397 = vpack.c.bf16 %v396, %v396
        %398 = vst [vmem:[#allocation2] sm:$0xf] %v397
        %p399 = scmp.eq.s32.totalorder %s28, 7
        // Predicated region
        $region49: #{tpu_custom_call.1} parent=31 // pred_check
          %p400 = pneg %p399
        $region50: #{tpu_custom_call.1} parent=31 // pred_check_branch
          %402 = sbr.rel (%p400) target = $region52
        $region51: #{tpu_custom_call.1} parent=31 // pred_region
          %403 = vst [vmem:[%s268] sm:$0xff] %v396
        $region52: #{tpu_custom_call.1} parent=31 // pred_fallthru
          _
        %s404 = sand.u32 %s121, 1
        %s405 = scalar_lea.sflag [#allocation5], %s404
        %s406 = sand.u32 %s121, 1
        %s407 = smul.addr %s406, 8
        %s408 = scalar_lea.vmem [#allocation9], %s407
        // Predicated region
        $region53: #{tpu_custom_call.1} parent=31 // pred_check
          %p409 = pneg %p131
        $region54: #{tpu_custom_call.1} parent=31 // pred_check_branch
          %411 = sbr.rel (%p409) target = $region56
        $region55: #{tpu_custom_call.1} parent=31 // pred_region
          %s413 = ssub.s32 128, 128
          %414 = vsyncadd %s405, %s413
          %s415 = smul.addr %s27, 128
          %s416 = scalar_lea.hbm %s3, %s415
          %s418 = sshll.u32 %s408, 4
          %s419 = int_to_ptr.vmem [resolvable:$true] %s418
          %421 = dma.vmem_to_hbm [thread:$0]  %s419, 128, %s416, %s405
        $region56: #{tpu_custom_call.1} parent=31 // pred_fallthru
          _
      $region32: #{tpu_custom_call.1} parent=5 // pred_fallthru
        _
      %p422 = scmp.le.s32.totalorder 2, %s18
      // Predicated region
      $region57: #{tpu_custom_call.1} parent=5 // pred_check
        %p423 = pneg %p422
      $region58: #{tpu_custom_call.1} parent=5 // pred_check_branch
        %425 = sbr.rel (%p423) target = $region60
      $region59: #{tpu_custom_call.1} parent=5 // pred_region
        %s426 = ssub.s32 %s18, 2
        // Predicated region
        $region61: #{tpu_custom_call.1} parent=59 // pred_check
          %p427 = pneg %p137
        $region62: #{tpu_custom_call.1} parent=59 // pred_check_branch
          %429 = sbr.rel (%p427) target = $region64
        $region63: #{tpu_custom_call.1} parent=59 // pred_region
          %s430 = sand.u32 %s122, 1
          %s431 = scalar_lea.sflag [#allocation5], %s430
          %s432 = sand.u32 %s122, 1
          %s433 = smul.addr %s432, 8
          %s434 = scalar_lea.vmem [#allocation9], %s433
          %435 = dma.done %s431, 128
        $region64: #{tpu_custom_call.1} parent=59 // pred_fallthru
          _
      $region60: #{tpu_custom_call.1} parent=5 // pred_fallthru
        _
    $region6: #{tpu_custom_call.1} parent=1 // loop_footer
      %s22 = sadd.s32 1, %s18
    $region7: #{tpu_custom_call.1} parent=1 // loop_footer_branch
      %17 = sbr.rel target = $region3
    $region8: #{tpu_custom_call.1} parent=1 // loop_exit
      _
    %436 = vsyncpa [#allocation4], 1
    %s437 = scalar_lea.sflag [#allocation4], 1
    %438 = vsyncpa %s437, 1
    %439 = vsyncpa [#allocation7], 1
    %s440 = scalar_lea.sflag [#allocation7], 1
    %441 = vsyncpa %s440, 1
    %442 = vsyncpa [#allocation5], 1
    %s443 = scalar_lea.sflag [#allocation5], 1
    %444 = vsyncpa %s443, 1

</llo_original>
